<compile_context>
chip_gen: v5e
topology: v5e:2x2
jax: 0.10.0
libtpu: 0.0.40
codegen_flags: <defaults>
</compile_context>

<pallas_src>
import functools

import jax
import jax.numpy as jnp
from jax import lax
from jax.experimental import pallas as pl
from jax.experimental.pallas import tpu as pltpu


def _round_up(x, m):
    return ((x + m - 1) // m) * m


def _batch_matched_mse_kernel(x_ref, y_ref, x2_ref, y2_ref, out_ref,
                              min_ref, *acc_refs, num_k, inv_d):
    """Grid step (i, j, k):

    x_ref   : (TM, TK)   input row tile (rows i-block, features k-block)
    y_ref   : (TN, TK)   target row tile
    x2_ref  : (TM, 1)    precomputed ||x||^2 (f32)
    y2_ref  : (1, TN)    precomputed ||y||^2 (f32, padded cols = 1e30 sentinel)
    out_ref : (TM, 1)    per-row min MSE (written on last j,k step)
    min_ref : (TM, 128)  lane-wide running min of (y2 - 2 x.y), f32 scratch
    acc_refs: ((TM, TN) f32 xy accumulator,) only when num_k > 1
    """
    j = pl.program_id(1)
    k = pl.program_id(2)
    nj = pl.num_programs(1)

    @pl.when((j == 0) & (k == 0))
    def _init_min():
        min_ref[...] = jnp.full(min_ref.shape, jnp.inf, min_ref.dtype)

    # MXU: (TM, TN) partial Gram matrix for this K block.
    xy_part = lax.dot_general(x_ref[...], y_ref[...],
                              (((1,), (1,)), ((), ())),
                              preferred_element_type=jnp.float32)

    if num_k == 1:
        def _get_xy():
            return xy_part
    else:
        acc_ref = acc_refs[0]

        @pl.when(k == 0)
        def _zero_acc():
            acc_ref[...] = jnp.zeros_like(acc_ref)

        acc_ref[...] += xy_part

        def _get_xy():
            return acc_ref[...]

    @pl.when(k == num_k - 1)
    def _update_min():
        # min_j (x2 + y2 - 2xy) = x2 + min_j (y2 - 2xy): only track y2 - 2xy.
        s = y2_ref[...] - 2.0 * _get_xy()          # (TM, TN), f32
        tn = s.shape[1]
        lanes = s[:, :128]                          # VPU min across 128-chunks
        for c in range(1, tn // 128):
            lanes = jnp.minimum(lanes, s[:, c * 128:(c + 1) * 128])
        min_ref[...] = jnp.minimum(min_ref[...], lanes)

    @pl.when((k == num_k - 1) & (j == nj - 1))
    def _finalize():
        # Single cross-lane (XLU) reduce per row block; +x2, clamp and 1/D all
        # commute with the min so they are applied once here.
        row_min = jnp.min(min_ref[...], axis=-1, keepdims=True)   # (TM, 1)
        mse = jnp.maximum(x2_ref[...] + row_min, 0.0) * inv_d
        out_ref[...] = mse.astype(out_ref.dtype)


def batch_matched_mse_loss2(inputs, targets, reduction="mean",
                            matmul_dtype=None):
    """Pallas implementation of BatchMatchedMSELoss2.forward.

    matmul_dtype: optionally cast the dot operands (e.g. jnp.bfloat16) for
    MXU-native throughput; norms / accumulation / min stay in f32.
    """
    assert inputs.ndim == 2 and targets.ndim == 2
    assert inputs.shape[1] == targets.shape[1]
    B_in, D = inputs.shape
    B_tg = targets.shape[0]

    # ---- tile selection -------------------------------------------------
    B_in_8 = _round_up(B_in, 8)
    if B_in_8 <= 16:
        TM = B_in_8
    elif B_in_8 <= 1024:
        # Split rows into (at least) two blocks so both v7x TensorCores get
        # work via the "parallel" axis; harmless on single-TC v5e/v6e.
        TM = _round_up((B_in_8 + 1) // 2, 8)
    else:
        TM = 512

    B_tg_128 = _round_up(B_tg, 128)
    TN = min(B_tg_128, 512)

    D_pad128 = _round_up(D, 128)
    TK = min(D_pad128, 1024)              # K tiling keeps VMEM constant in D

    B_in_pad = _round_up(B_in, TM)
    B_tg_pad = _round_up(B_tg, TN)
    D_pad = _round_up(D_pad128, TK)

    num_i = B_in_pad // TM
    num_j = B_tg_pad // TN
    num_k = D_pad // TK
    grid = (num_i, num_j, num_k)

    # ---- operand preparation (pad, precompute norms, mask bakes) --------
    x_pad = jnp.pad(inputs, ((0, B_in_pad - B_in), (0, D_pad - D)))
    y_pad = jnp.pad(targets, ((0, B_tg_pad - B_tg), (0, D_pad - D)))

    # Squared norms in f32 (padded feature columns are zero -> no effect).
    x2 = jnp.sum(jnp.square(x_pad.astype(jnp.float32)), axis=-1,
                 keepdims=True)                                   # (B_in_pad, 1)
    y2_row = jnp.sum(jnp.square(y_pad.astype(jnp.float32)), axis=-1)
    # Finite sentinel (NOT inf: keeps y2 - 2*xy finite) so padded target rows
    # never win the row-wise min.
    y2_row = jnp.where(jnp.arange(B_tg_pad) < B_tg, y2_row, 1e30)
    y2 = y2_row[None, :]                                          # (1, B_tg_pad)

    if matmul_dtype is not None:
        x_mm = x_pad.astype(matmul_dtype)
        y_mm = y_pad.astype(matmul_dtype)
    else:
        x_mm, y_mm = x_pad, y_pad

    # ---- VMEM budget -----------------------------------------------------
    try:
        phys_vmem = int(pltpu.get_tpu_info().vmem_capacity_bytes)
    except Exception:
        phys_vmem = 64 << 20          # conservative (v7x per-TC) fallback
    vmem_budget = (phys_vmem * 3) // 4

    bpe = x_mm.dtype.itemsize
    need = (2 * TM * TK * bpe                 # x tiles, double-buffered
            + 2 * TN * TK * bpe               # y tiles, double-buffered
            + 2 * (TM + TN + TM) * 4          # x2 / y2 / out blocks
            + (TM * TN * 4 if num_k > 1 else 0)   # xy accumulator scratch
            + TM * 128 * 4)                   # lane-wide running min
    vmem_limit = int(max(1 << 20, min(vmem_budget, need + (4 << 20))))

    # ---- cost estimate (inputs fetched once unless K is tiled) ----------
    x_reads = 1 if num_k == 1 else num_j
    y_reads = 1 if (num_j == 1 and num_k == 1) else num_i
    cost = pl.CostEstimate(
        flops=2 * B_in_pad * B_tg_pad * D_pad,
        transcendentals=0,
        bytes_accessed=(bpe * B_in_pad * D_pad * x_reads
                        + bpe * B_tg_pad * D_pad * y_reads
                        + 4 * (2 * B_in_pad + B_tg_pad)),
    )

    kernel = functools.partial(_batch_matched_mse_kernel,
                               num_k=num_k, inv_d=1.0 / float(D))

    scratch_shapes = [pltpu.VMEM((TM, 128), jnp.float32)]
    if num_k > 1:
        scratch_shapes.append(pltpu.VMEM((TM, TN), jnp.float32))

    row_min_pad = pl.pallas_call(
        kernel,
        out_shape=jax.ShapeDtypeStruct((B_in_pad, 1), jnp.float32),
        grid_spec=pltpu.PrefetchScalarGridSpec(
            num_scalar_prefetch=0,
            grid=grid,
            in_specs=[
                pl.BlockSpec((TM, TK), lambda i, j, k: (i, k)),   # x tile
                pl.BlockSpec((TN, TK), lambda i, j, k: (j, k)),   # y tile
                pl.BlockSpec((TM, 1), lambda i, j, k: (i, 0)),    # ||x||^2
                pl.BlockSpec((1, TN), lambda i, j, k: (0, j)),    # ||y||^2
            ],
            out_specs=pl.BlockSpec((TM, 1), lambda i, j, k: (i, 0)),
            scratch_shapes=scratch_shapes,
        ),
        compiler_params=pltpu.CompilerParams(
            dimension_semantics=("parallel", "arbitrary", "arbitrary"),
            vmem_limit_bytes=vmem_limit),
        cost_estimate=cost,
    )(x_mm, y_mm, x2, y2)

    loss = row_min_pad[:B_in, 0]
    if reduction == "mean":
        return jnp.mean(loss)
    elif reduction == "sum":
        return jnp.sum(loss)
    elif reduction == "median":
        # torch.median returns the lower of the two middle values.
        return jnp.sort(loss)[(B_in - 1) // 2]
    # Matches the PyTorch fall-through: unreduced per-row loss.
    return loss


def _reference(inputs, targets, reduction="mean"):
    diff = inputs[:, None, :] - targets[None, :, :]
    mse = jnp.mean(diff * diff, axis=-1)
    loss = jnp.min(mse, axis=1)
    if reduction == "mean":
        return jnp.mean(loss)
    elif reduction == "sum":
        return jnp.sum(loss)
    elif reduction == "median":
        return jnp.sort(loss)[(loss.shape[0] - 1) // 2]
    return loss


if __name__ == "__main__":
    key = jax.random.PRNGKey(0)
    k1, k2, k3, k4 = jax.random.split(key, 4)

    # Aligned small case.
    B, D = 16, 32
    inputs = jax.random.normal(k1, (B, D), dtype=jnp.float32)
    targets = jax.random.normal(k2, (B, D), dtype=jnp.float32)
    loss = jax.block_until_ready(
        batch_matched_mse_loss2(inputs, targets, reduction="mean"))
    ref = _reference(inputs, targets, reduction="mean")
    assert jnp.allclose(loss, ref, rtol=1e-4, atol=1e-5), (loss, ref)

    # Unaligned / padded case (exercises row, target and feature padding).
    inputs2 = jax.random.normal(k3, (10, 20), dtype=jnp.float32)
    targets2 = jax.random.normal(k4, (14, 20), dtype=jnp.float32)
    loss2 = jax.block_until_ready(
        batch_matched_mse_loss2(inputs2, targets2, reduction="sum"))
    ref2 = _reference(inputs2, targets2, reduction="sum")
    assert jnp.allclose(loss2, ref2, rtol=1e-4, atol=1e-5), (loss2, ref2)

    loss3 = jax.block_until_ready(
        batch_matched_mse_loss2(inputs2, targets2, reduction="median"))
    ref3 = _reference(inputs2, targets2, reduction="median")
    assert jnp.allclose(loss3, ref3, rtol=1e-4, atol=1e-5), (loss3, ref3)

    # Opt-in bf16 MXU path (native rate; looser accuracy) -- just verify it
    # runs and produces a finite result.
    loss_bf16 = jax.block_until_ready(
        batch_matched_mse_loss2(inputs, targets, reduction="mean",
                                matmul_dtype=jnp.bfloat16))
    assert bool(jnp.isfinite(loss_bf16))

    print("KERNEL_OK")
</pallas_src>

<mosaic_0001>
module attributes {stable_mosaic.version = 11 : i64} {
  func.func @_batch_matched_mse_kernel(%arg0: i32, %arg1: i32, %arg2: i32, %arg3: memref<16x128xf32, #tpu.memory_space<vmem>>, %arg4: memref<128x128xf32, #tpu.memory_space<vmem>>, %arg5: memref<16x1xf32, #tpu.memory_space<vmem>>, %arg6: memref<1x128xf32, #tpu.memory_space<vmem>>, %arg7: memref<16x1xf32, #tpu.memory_space<vmem>>, %arg8: memref<16x128xf32, #tpu.memory_space<vmem>>) attributes {dimension_semantics = [#tpu.dimension_semantics<parallel>, #tpu.dimension_semantics<arbitrary>, #tpu.dimension_semantics<arbitrary>], iteration_bounds = array<i64: 1, 1, 1>, scalar_prefetch = 0 : i64, scratch_operands = 1 : i64, tpu.core_type = #tpu.core_type<tc>, window_params = [{transform_indices = @transform_0, window_bounds = array<i64: 16, 128>}, {transform_indices = @transform_1, window_bounds = array<i64: 128, 128>}, {transform_indices = @transform_2, window_bounds = array<i64: 16, 1>}, {transform_indices = @transform_3, window_bounds = array<i64: 1, 128>}, {transform_indices = @transform_4, window_bounds = array<i64: 16, 1>}]} {
    %c0_i32 = arith.constant 0 : i32
    %0 = arith.cmpi eq, %arg1, %c0_i32 : i32
    %c0_i32_0 = arith.constant 0 : i32
    %1 = arith.cmpi eq, %arg2, %c0_i32_0 : i32
    %2 = arith.andi %0, %1 : i1
    %3 = arith.extui %2 : i1 to i32
    %c0_i32_1 = arith.constant 0 : i32
    %4 = arith.cmpi ne, %3, %c0_i32_1 : i32
    scf.if %4 {
      %cst_10 = arith.constant 0x7F800000 : f32
      %16 = vector.broadcast %cst_10 : f32 to vector<16x128xf32>
      %c0_11 = arith.constant 0 : index
      %c0_12 = arith.constant 0 : index
      %17 = vector.load %arg8[%c0_11, %c0_12] : memref<16x128xf32, #tpu.memory_space<vmem>>, vector<16x128xf32>
      tpu.vector_store %arg8[%c0_11, %c0_12], %16 {strides = array<i32>} : memref<16x128xf32, #tpu.memory_space<vmem>>, vector<16x128xf32>,
    } else {
    }
    %c0 = arith.constant 0 : index
    %c0_2 = arith.constant 0 : index
    %5 = vector.load %arg3[%c0, %c0_2] : memref<16x128xf32, #tpu.memory_space<vmem>>, vector<16x128xf32>
    %c0_3 = arith.constant 0 : index
    %c0_4 = arith.constant 0 : index
    %6 = vector.load %arg4[%c0_3, %c0_4] : memref<128x128xf32, #tpu.memory_space<vmem>>, vector<128x128xf32>
    %cst = arith.constant dense<0.000000e+00> : vector<16x128xf32>
    %7 = tpu.matmul %5, %6, %cst {dimension_numbers = #tpu.dot_dimension_numbers<[1], [1], [0], [0], [0, 0, 1, 0], [], []>} : vector<16x128xf32>, vector<128x128xf32>, vector<16x128xf32> -> vector<16x128xf32>
    %c0_i32_5 = arith.constant 0 : i32
    %8 = arith.cmpi eq, %arg2, %c0_i32_5 : i32
    %9 = arith.extui %8 : i1 to i32
    %c0_i32_6 = arith.constant 0 : i32
    %10 = arith.cmpi ne, %9, %c0_i32_6 : i32
    scf.if %10 {
      %c0_10 = arith.constant 0 : index
      %c0_11 = arith.constant 0 : index
      %16 = vector.load %arg6[%c0_10, %c0_11] : memref<1x128xf32, #tpu.memory_space<vmem>>, vector<1x128xf32>
      %cst_12 = arith.constant 2.000000e+00 : f32
      %17 = vector.broadcast %cst_12 : f32 to vector<16x128xf32>
      %18 = arith.mulf %17, %7 : vector<16x128xf32>
      %19 = vector.broadcast %16 : vector<1x128xf32> to vector<16x128xf32>
      %20 = arith.subf %19, %18 : vector<16x128xf32>
      %c0_13 = arith.constant 0 : index
      %c0_14 = arith.constant 0 : index
      %21 = vector.load %arg8[%c0_13, %c0_14] : memref<16x128xf32, #tpu.memory_space<vmem>>, vector<16x128xf32>
      %22 = arith.minimumf %21, %20 : vector<16x128xf32>
      %c0_15 = arith.constant 0 : index
      %c0_16 = arith.constant 0 : index
      %23 = vector.load %arg8[%c0_15, %c0_16] : memref<16x128xf32, #tpu.memory_space<vmem>>, vector<16x128xf32>
      tpu.vector_store %arg8[%c0_15, %c0_16], %22 {strides = array<i32>} : memref<16x128xf32, #tpu.memory_space<vmem>>, vector<16x128xf32>,
    } else {
    }
    %c0_i32_7 = arith.constant 0 : i32
    %11 = arith.cmpi eq, %arg2, %c0_i32_7 : i32
    %c0_i32_8 = arith.constant 0 : i32
    %12 = arith.cmpi eq, %arg1, %c0_i32_8 : i32
    %13 = arith.andi %11, %12 : i1
    %14 = arith.extui %13 : i1 to i32
    %c0_i32_9 = arith.constant 0 : i32
    %15 = arith.cmpi ne, %14, %c0_i32_9 : i32
    scf.if %15 {
      %c0_10 = arith.constant 0 : index
      %c0_11 = arith.constant 0 : index
      %16 = vector.load %arg8[%c0_10, %c0_11] : memref<16x128xf32, #tpu.memory_space<vmem>>, vector<16x128xf32>
      %cst_12 = arith.constant dense<0x7F800000> : vector<16xf32>
      %17 = vector.multi_reduction <minimumf>, %16, %cst_12 [1] : vector<16x128xf32> to vector<16xf32>
      %18 = vector.shape_cast %17 : vector<16xf32> to vector<16x1xf32>
      %c0_13 = arith.constant 0 : index
      %c0_14 = arith.constant 0 : index
      %19 = vector.load %arg5[%c0_13, %c0_14] : memref<16x1xf32, #tpu.memory_space<vmem>>, vector<16x1xf32>
      %20 = arith.addf %19, %18 : vector<16x1xf32>
      %cst_15 = arith.constant 0.000000e+00 : f32
      %21 = vector.broadcast %cst_15 : f32 to vector<16x1xf32>
      %22 = arith.maximumf %20, %21 : vector<16x1xf32>
      %cst_16 = arith.constant 3.125000e-02 : f32
      %23 = vector.broadcast %cst_16 : f32 to vector<16x1xf32>
      %24 = arith.mulf %22, %23 : vector<16x1xf32>
      %c0_17 = arith.constant 0 : index
      %c0_18 = arith.constant 0 : index
      %25 = vector.load %arg7[%c0_17, %c0_18] : memref<16x1xf32, #tpu.memory_space<vmem>>, vector<16x1xf32>
      tpu.vector_store %arg7[%c0_17, %c0_18], %24 {strides = array<i32>} : memref<16x1xf32, #tpu.memory_space<vmem>>, vector<16x1xf32>,
    } else {
    }
    return
  }
  func.func @transform_0(%arg0: i32, %arg1: i32, %arg2: i32) -> (i32, i32) {
    %c0_i32 = arith.constant 0 : i32
    return %arg0, %arg2 : i32, i32
  }
  func.func @transform_1(%arg0: i32, %arg1: i32, %arg2: i32) -> (i32, i32) {
    %c0_i32 = arith.constant 0 : i32
    return %arg1, %arg2 : i32, i32
  }
  func.func @transform_2(%arg0: i32, %arg1: i32, %arg2: i32) -> (i32, i32) {
    %c0_i32 = arith.constant 0 : i32
    %c0_i32_0 = arith.constant 0 : i32
    return %arg0, %c0_i32 : i32, i32
  }
  func.func @transform_3(%arg0: i32, %arg1: i32, %arg2: i32) -> (i32, i32) {
    %c0_i32 = arith.constant 0 : i32
    %c0_i32_0 = arith.constant 0 : i32
    return %c0_i32, %arg1 : i32, i32
  }
  func.func @transform_4(%arg0: i32, %arg1: i32, %arg2: i32) -> (i32, i32) {
    %c0_i32 = arith.constant 0 : i32
    %c0_i32_0 = arith.constant 0 : i32
    return %arg0, %c0_i32 : i32, i32
  }
}

</mosaic_0001>

<llo_original>
// kernel: tpu_custom_call.1
$region0: #{tpu_custom_call.1}
  #allocation0 [shape = 'u32[]', space=smem, size = 0x4, offset = 0x4, fixed_abs, tag = 'smem constant byte address 0x4 - core index']
  #allocation1 [shape = 'u32[72,128]{1,0:T(1,128)}', space=vmem, size = 0x9000, scoped, tag = 'internal scratch']
  #allocation2 [shape = 'f32[16,128]{1,0:T(8,128)}', space=vmem, size = 0x2000, scoped, tag = 'scratch operand']
  %s0 = inlined_call_operand.vmem [shape: f32[16,128], index: 0, kind: input, shape index: {}]
  %s1 = inlined_call_operand.hbm [shape: f32[128,128], index: 1, kind: input, shape index: {}]
  %s2 = inlined_call_operand.vmem [shape: f32[16,1], index: 2, kind: input, shape index: {}]
  %s3 = inlined_call_operand.vmem [shape: f32[1,128], index: 3, kind: input, shape index: {}]
  %s4 = inlined_call_operand.vmem [shape: f32[16,1], index: 4, kind: output, shape index: {}]
  %s5 = sld [smem:[#allocation0]]
  $region42: #{tpu_custom_call.1} parent=0
    _
  %s7 = ssub.s32 1, %s5
  %s8 = scalar_select 0, %s7, %s5
  $region1: #{tpu_custom_call.1} parent=0
    #allocation3 [shape = 'u8[65536]{0}', space=vmem, size = 0x10000, scoped, tag = 'input window, operand 1, single buffered']
    #allocation4 [shape = 's32[1]{0}', space=sflag, size = 0x4, scoped, tag = 'scoped memory for tpu_custom_call.1']
    %9 = vsyncpa [#allocation4], 0
    // Predicated region
    $region2: #{tpu_custom_call.1} parent=1 // pred_check
      _
    $region3: #{tpu_custom_call.1} parent=1 // pred_check_branch
      %11 = sbr.rel (0) target = $region5
    $region4: #{tpu_custom_call.1} parent=1 // pred_region
      _
    $region5: #{tpu_custom_call.1} parent=1 // pred_fallthru
      _
    // Predicated region
    $region6: #{tpu_custom_call.1} parent=1 // pred_check
      _
    $region7: #{tpu_custom_call.1} parent=1 // pred_check_branch
      %13 = sbr.rel (0) target = $region9
    $region8: #{tpu_custom_call.1} parent=1 // pred_region
      %15 = vsyncadd [#allocation4], 0
      %s16 = sshll.u32 %s1, 4
      %s17 = int_to_ptr.hbm [resolvable:$true] %s16
      %s18 = sshll.u32 [#allocation3], 4
      %s19 = int_to_ptr.vmem [resolvable:$true] %s18
      %24 = dma.hbm_to_vmem [thread:$0]  %s17, 2048, %s19, [#allocation4], 128, 128, 8
    $region9: #{tpu_custom_call.1} parent=1 // pred_fallthru
      _
    // Predicated region
    $region10: #{tpu_custom_call.1} parent=1 // pred_check
      _
    $region11: #{tpu_custom_call.1} parent=1 // pred_check_branch
      %26 = sbr.rel (0) target = $region13
    $region12: #{tpu_custom_call.1} parent=1 // pred_region
      _
    $region13: #{tpu_custom_call.1} parent=1 // pred_fallthru
      _
    // Predicated region
    $region14: #{tpu_custom_call.1} parent=1 // pred_check
      _
    $region15: #{tpu_custom_call.1} parent=1 // pred_check_branch
      %28 = sbr.rel (0) target = $region17
    $region16: #{tpu_custom_call.1} parent=1 // pred_region
      _
    $region17: #{tpu_custom_call.1} parent=1 // pred_fallthru
      _
    // Predicated region
    $region18: #{tpu_custom_call.1} parent=1 // pred_check
      _
    $region19: #{tpu_custom_call.1} parent=1 // pred_check_branch
      %30 = sbr.rel (0) target = $region21
    $region20: #{tpu_custom_call.1} parent=1 // pred_region
      %32 = dma.done [#allocation4], 2048
    $region21: #{tpu_custom_call.1} parent=1 // pred_fallthru
      _
    %p33 = scmp.eq.s32.totalorder 0, 0
    %p34 = scmp.eq.s32.totalorder 0, 0
    %p35 = pnand %p33, %p34
    %p36 = pneg %p35
    // Predicated region
    $region22: #{tpu_custom_call.1} parent=1 // pred_check
      _
    $region23: #{tpu_custom_call.1} parent=1 // pred_check_branch
      %38 = sbr.rel (%p35) target = $region25
    $region24: #{tpu_custom_call.1} parent=1 // pred_region
      %39 = vst [vmem:[#allocation2] sm:$0xff] inf
      %40 = vst [vmem:[#allocation2 + $0x8] sm:$0xff] inf
    $region25: #{tpu_custom_call.1} parent=1 // pred_fallthru
      _
    %v41 = vld [vmem:[%s0] sm:$0xff]
    %v42 = vld [vmem:[%s0 + $0x8] sm:$0xff]
    %v43 = vld [vmem:[#allocation3] sm:$0xff]
    %v44 = vld [vmem:[#allocation3 + $0x8] sm:$0xff]
    %v45 = vld [vmem:[#allocation3 + $0x10] sm:$0xff]
    %v46 = vld [vmem:[#allocation3 + $0x18] sm:$0xff]
    %v47 = vld [vmem:[#allocation3 + $0x20] sm:$0xff]
    %v48 = vld [vmem:[#allocation3 + $0x28] sm:$0xff]
    %v49 = vld [vmem:[#allocation3 + $0x30] sm:$0xff]
    %v50 = vld [vmem:[#allocation3 + $0x38] sm:$0xff]
    %v51 = vld [vmem:[#allocation3 + $0x40] sm:$0xff]
    %v52 = vld [vmem:[#allocation3 + $0x48] sm:$0xff]
    %v53 = vld [vmem:[#allocation3 + $0x50] sm:$0xff]
    %v54 = vld [vmem:[#allocation3 + $0x58] sm:$0xff]
    %v55 = vld [vmem:[#allocation3 + $0x60] sm:$0xff]
    %v56 = vld [vmem:[#allocation3 + $0x68] sm:$0xff]
    %v57 = vld [vmem:[#allocation3 + $0x70] sm:$0xff]
    %v58 = vld [vmem:[#allocation3 + $0x78] sm:$0xff]
    %59 = vmatpush.xpose.msra.mxu0 %v58
    %60 = vmatpush.xpose.msra.mxu0 %v57
    %61 = vmatpush.xpose.msra.mxu0 %v56
    %62 = vmatpush.xpose.msra.mxu0 %v55
    %63 = vmatpush.xpose.msra.mxu0 %v54
    %64 = vmatpush.xpose.msra.mxu0 %v53
    %65 = vmatpush.xpose.msra.mxu0 %v52
    %66 = vmatpush.xpose.msra.mxu0 %v51
    %67 = vmatpush.xpose.msra.mxu0 %v50
    %68 = vmatpush.xpose.msra.mxu0 %v49
    %69 = vmatpush.xpose.msra.mxu0 %v48
    %70 = vmatpush.xpose.msra.mxu0 %v47
    %71 = vmatpush.xpose.msra.mxu0 %v46
    %72 = vmatpush.xpose.msra.mxu0 %v45
    %73 = vmatpush.xpose.msra.mxu0 %v44
    %74 = vmatpush.xpose.msra.mxu0 %v43
    %75 = vmatmul.f32.gmra.mxu0 %v41
    %v76 = vpop.f32.mrf.mxu0
    %v77 = vadd.f32 0.0, %v76
    %78 = vmatmul.f32.gmra.mxu0 %v42
    %v79 = vpop.f32.mrf.mxu0
    %v80 = vadd.f32 0.0, %v79
    %81 = vdwg.mxu0
    // Predicated region
    $region26: #{tpu_custom_call.1} parent=1 // pred_check
      %p82 = pneg %p34
    $region27: #{tpu_custom_call.1} parent=1 // pred_check_branch
      %84 = sbr.rel (%p82) target = $region29
    $region28: #{tpu_custom_call.1} parent=1 // pred_region
      %v85 = vld [vmem:[%s3] sm:$0x1]
      %v86 = vmul.f32 %v77, 2.0
      %v87 = vmul.f32 %v80, 2.0
      %v89 = vperm.slane %v85, 0
      %v91 = vsub.f32 %v89, %v86
      %v92 = vsub.f32 %v89, %v87
      %v93 = vld [vmem:[#allocation2] sm:$0xff]
      %v94 = vld [vmem:[#allocation2 + $0x8] sm:$0xff]
      %v95 = vmin.f32 %v93, %v91
      %v96 = vmin.f32 %v94, %v92
      %97 = vst [vmem:[#allocation2] sm:$0xff] %v95
      %98 = vst [vmem:[#allocation2 + $0x8] sm:$0xff] %v96
    $region29: #{tpu_custom_call.1} parent=1 // pred_fallthru
      _
    // Predicated region
    $region30: #{tpu_custom_call.1} parent=1 // pred_check
      _
    $region31: #{tpu_custom_call.1} parent=1 // pred_check_branch
      %100 = sbr.rel (%p35) target = $region33
    $region32: #{tpu_custom_call.1} parent=1 // pred_region
      %v101 = vld [vmem:[#allocation2] sm:$0xff]
      %v102 = vld [vmem:[#allocation2 + $0x8] sm:$0xff]
      %103 = vmin.xlane.f32.xlu0 %v101
      %v104 = vpop.xlane.xlu0 %103
      %105 = vmin.xlane.f32.xlu0 %v102
      %v106 = vpop.xlane.xlu0 %105
      %v107 = vld [vmem:[%s2] sm:$0xff]
      %v108 = vld [vmem:[%s2 + $0x8] sm:$0xff]
      %v109 = vadd.f32 %v107, %v104
      %v110 = vadd.f32 %v108, %v106
      %v111 = vmax.f32 %v109, 0.0
      %v112 = vmax.f32 %v110, 0.0
      %v113 = vmul.f32 %v111, 0.03125
      %v114 = vmul.f32 %v112, 0.03125
      %vm115 = vcmask 7168
      %116 = vst.msk [vmem:[%s4] sm:$0xff] %vm115, %v113
      %117 = vst.msk [vmem:[%s4 + $0x8] sm:$0xff] %vm115, %v114
    $region33: #{tpu_custom_call.1} parent=1 // pred_fallthru
      _
    // Predicated region
    $region34: #{tpu_custom_call.1} parent=1 // pred_check
      _
    $region35: #{tpu_custom_call.1} parent=1 // pred_check_branch
      %119 = sbr.rel (0) target = $region37
    $region36: #{tpu_custom_call.1} parent=1 // pred_region
      _
    $region37: #{tpu_custom_call.1} parent=1 // pred_fallthru
      _
    // Predicated region
    $region38: #{tpu_custom_call.1} parent=1 // pred_check
      _
    $region39: #{tpu_custom_call.1} parent=1 // pred_check_branch
      %121 = sbr.rel (0) target = $region41
    $region40: #{tpu_custom_call.1} parent=1 // pred_region
      _
    $region41: #{tpu_custom_call.1} parent=1 // pred_fallthru
      _
    %122 = vsyncpa [#allocation4], 1

</llo_original>
